<compile_context>
chip_gen: v5e
topology: v5e:2x2
jax: 0.10.0
libtpu: 0.0.40
codegen_flags: <defaults>
</compile_context>

<pallas_src>
import functools

import jax
import jax.numpy as jnp
from jax.experimental import pallas as pl
from jax.experimental.pallas import tpu as pltpu


def _encoder_kernel_single(x_ref, w_ref, o_ref):
    # Full contraction in one grid step: x[tm, K] . w[tn, K]^T -> [tm, tn].
    scores = jax.lax.dot_general(
        x_ref[...],
        w_ref[...],
        dimension_numbers=(((1,), (1,)), ((), ())),  # contract K with K (w is [N, K])
        preferred_element_type=jnp.float32,
    )
    # sign() followed by hard_quantize() == where(v > 0, 1, -1)   (v == 0 -> -1)
    o_ref[...] = jnp.where(scores > 0, 1.0, -1.0).astype(o_ref.dtype)


def _encoder_kernel_ksplit(x_ref, w_ref, o_ref):
    # grid = (M tiles, N tiles, K tiles); accumulate straight into the f32
    # output block (resident across K), no separate scratch accumulator.
    k = pl.program_id(2)
    partial = jax.lax.dot_general(
        x_ref[...],
        w_ref[...],
        dimension_numbers=(((1,), (1,)), ((), ())),
        preferred_element_type=jnp.float32,
    )

    @pl.when(k == 0)
    def _():
        o_ref[...] = partial

    @pl.when(k != 0)
    def _():
        o_ref[...] += partial

    @pl.when(k == pl.num_programs(2) - 1)
    def _():
        o_ref[...] = jnp.where(o_ref[...] > 0, 1.0, -1.0)


@functools.partial(jax.jit, static_argnames=("tm", "tn", "tk"))
def encoder_forward(x, weight, *, tm=None, tn=None, tk=None):
    """x: [B, C, H, W] float; weight: [dimensions, size] (Projection weight, bf16 or f32)."""
    B = x.shape[0]
    x_flat = x.reshape(B, -1).astype(weight.dtype)  # Flatten + cast to compute dtype
    size = x_flat.shape[1]
    dimensions = weight.shape[0]
    wbytes = jnp.dtype(weight.dtype).itemsize

    # ---- tile selection (static shapes under jit) ------------------------
    if tn is None:
        if dimensions % 512 == 0 and dimensions >= 4096:
            tn = 512
        elif dimensions % 256 == 0:
            tn = 256
        else:
            tn = 128
    if tm is None:
        tm = B if B <= 128 else 128
    if tk is None:
        # Keep each (double-buffered) W tile well inside the scoped VMEM limit.
        w_block_budget = 6 * 1024 * 1024  # bytes per W block
        tk_cap = max(512, ((w_block_budget // (tn * wbytes)) // 512) * 512)
        tk = size if size <= tk_cap else tk_cap

    # ---- padding (no-op for shapes that already divide the tiles) --------
    Mp = pl.cdiv(B, tm) * tm
    Np = pl.cdiv(dimensions, tn) * tn
    Kp = size if tk == size else pl.cdiv(size, tk) * tk
    if Mp != B or Kp != size:
        x_flat = jnp.pad(x_flat, ((0, Mp - B), (0, Kp - size)))
    if Np != dimensions or Kp != size:
        # NOTE: padding W costs one extra HBM pass; it only triggers for
        # non-divisible shapes (zero rows/cols do not change the result).
        weight = jnp.pad(weight, ((0, Np - dimensions), (0, Kp - size)))

    compiler_params = pltpu.CompilerParams(
        dimension_semantics=("parallel", "parallel")
        if Kp == tk
        else ("parallel", "parallel", "arbitrary"),
        vmem_limit_bytes=32 * 1024 * 1024,
    )

    if Kp == tk:
        # Single K step: whole reduction per grid point, no accumulator state.
        grid = (Mp // tm, Np // tn)
        out = pl.pallas_call(
            _encoder_kernel_single,
            out_shape=jax.ShapeDtypeStruct((Mp, Np), jnp.float32),
            grid_spec=pltpu.PrefetchScalarGridSpec(
                num_scalar_prefetch=0,
                grid=grid,
                in_specs=[
                    pl.BlockSpec((tm, Kp), lambda i, j: (i, 0)),  # x rows
                    pl.BlockSpec((tn, Kp), lambda i, j: (j, 0)),  # W rows (no transpose)
                ],
                out_specs=pl.BlockSpec((tm, tn), lambda i, j: (i, j)),
            ),
            compiler_params=compiler_params,
        )(x_flat, weight)
    else:
        grid = (Mp // tm, Np // tn, Kp // tk)
        out = pl.pallas_call(
            _encoder_kernel_ksplit,
            out_shape=jax.ShapeDtypeStruct((Mp, Np), jnp.float32),
            grid_spec=pltpu.PrefetchScalarGridSpec(
                num_scalar_prefetch=0,
                grid=grid,
                in_specs=[
                    pl.BlockSpec((tm, tk), lambda i, j, k: (i, k)),
                    pl.BlockSpec((tn, tk), lambda i, j, k: (j, k)),
                ],
                out_specs=pl.BlockSpec((tm, tn), lambda i, j, k: (i, j)),
            ),
            compiler_params=compiler_params,
        )(x_flat, weight)

    if Mp != B or Np != dimensions:
        out = out[:B, :dimensions]
    return out


def init_projection_weight(key, size, dimensions, dtype=jnp.bfloat16):
    """torchhd.embeddings.Projection: normal(0,1) then L2-normalize rows.

    The normalized weight is cast once to bf16 (HBM-bandwidth win); the
    matmul still accumulates in f32 inside the kernel.
    """
    w = jax.random.normal(key, (dimensions, size), dtype=jnp.float32)
    norm = jnp.sqrt(jnp.sum(w * w, axis=1, keepdims=True))
    w = w / jnp.maximum(norm, 1e-12)
    return w.astype(dtype)


if __name__ == "__main__":
    # Small shapes consistent with the module: image batch, NCHW.
    B, C, H, W = 2, 4, 16, 16
    size = C * H * W          # 1024
    dimensions = 512          # hypervector dimensionality

    key = jax.random.PRNGKey(0)
    kx, kw = jax.random.split(key)
    x = jax.random.normal(kx, (B, C, H, W), dtype=jnp.float32)
    weight = init_projection_weight(kw, size, dimensions)  # bf16 [dims, size]

    out = encoder_forward(x, weight)
    out = jax.block_until_ready(out)
    assert out.shape == (B, dimensions)

    # Reference in plain JAX with the same bf16-rounded operands (f32 accumulate).
    xq = x.reshape(B, -1).astype(jnp.bfloat16).astype(jnp.float32)
    wq = weight.astype(jnp.float32)
    scores = xq @ wq.T
    ref = jnp.where(scores > 0, 1.0, -1.0)

    # Allow sign disagreement only for dot products essentially at zero
    # (differing MXU vs XLA accumulation order on bf16 inputs).
    mismatch = out != ref
    ok = bool(jnp.all(jnp.logical_or(~mismatch, jnp.abs(scores) < 1e-2)))
    assert ok, "kernel output disagrees with reference away from the zero boundary"
    print("KERNEL_OK")
</pallas_src>

<mosaic_0001>
module attributes {stable_mosaic.version = 11 : i64} {
  func.func @_encoder_kernel_single(%arg0: i32, %arg1: i32, %arg2: memref<2x1024xbf16, #tpu.memory_space<vmem>>, %arg3: memref<256x1024xbf16, #tpu.memory_space<vmem>>, %arg4: memref<2x256xf32, #tpu.memory_space<vmem>>) attributes {dimension_semantics = [#tpu.dimension_semantics<parallel>, #tpu.dimension_semantics<parallel>], iteration_bounds = array<i64: 1, 2>, scalar_prefetch = 0 : i64, scratch_operands = 0 : i64, tpu.core_type = #tpu.core_type<tc>, window_params = [{transform_indices = @transform_0, window_bounds = array<i64: 2, 1024>}, {transform_indices = @transform_1, window_bounds = array<i64: 256, 1024>}, {transform_indices = @transform_2, window_bounds = array<i64: 2, 256>}]} {
    %c0 = arith.constant 0 : index
    %c0_0 = arith.constant 0 : index
    %0 = vector.load %arg2[%c0, %c0_0] : memref<2x1024xbf16, #tpu.memory_space<vmem>>, vector<2x1024xbf16>
    %c0_1 = arith.constant 0 : index
    %c0_2 = arith.constant 0 : index
    %1 = vector.load %arg3[%c0_1, %c0_2] : memref<256x1024xbf16, #tpu.memory_space<vmem>>, vector<256x1024xbf16>
    %cst = arith.constant dense<0.000000e+00> : vector<2x256xf32>
    %2 = tpu.matmul %0, %1, %cst {dimension_numbers = #tpu.dot_dimension_numbers<[1], [1], [0], [0], [0, 0, 1, 0], [], []>} : vector<2x1024xbf16>, vector<256x1024xbf16>, vector<2x256xf32> -> vector<2x256xf32>
    %cst_3 = arith.constant 0.000000e+00 : f32
    %3 = vector.broadcast %cst_3 : f32 to vector<2x256xf32>
    %4 = arith.cmpf ogt, %2, %3 : vector<2x256xf32>
    %cst_4 = arith.constant 1.000000e+00 : f32
    %cst_5 = arith.constant -1.000000e+00 : f32
    %5 = vector.broadcast %cst_4 : f32 to vector<2x256xf32>
    %6 = vector.broadcast %cst_5 : f32 to vector<2x256xf32>
    %7 = arith.select %4, %5, %6 : vector<2x256xi1>, vector<2x256xf32>
    %c0_6 = arith.constant 0 : index
    %c0_7 = arith.constant 0 : index
    %8 = vector.load %arg4[%c0_6, %c0_7] : memref<2x256xf32, #tpu.memory_space<vmem>>, vector<2x256xf32>
    tpu.vector_store %arg4[%c0_6, %c0_7], %7 {strides = array<i32>} : memref<2x256xf32, #tpu.memory_space<vmem>>, vector<2x256xf32>,
    return
  }
  func.func @transform_0(%arg0: i32, %arg1: i32) -> (i32, i32) {
    %c0_i32 = arith.constant 0 : i32
    %c0_i32_0 = arith.constant 0 : i32
    return %arg0, %c0_i32 : i32, i32
  }
  func.func @transform_1(%arg0: i32, %arg1: i32) -> (i32, i32) {
    %c0_i32 = arith.constant 0 : i32
    %c0_i32_0 = arith.constant 0 : i32
    return %arg1, %c0_i32 : i32, i32
  }
  func.func @transform_2(%arg0: i32, %arg1: i32) -> (i32, i32) {
    %c0_i32 = arith.constant 0 : i32
    return %arg0, %arg1 : i32, i32
  }
}

</mosaic_0001>

<llo_original>
// kernel: encoder_forward.1
$region0: #{encoder_forward.1}
  #allocation0 [shape = 'u32[]', space=smem, size = 0x4, offset = 0x4, fixed_abs, tag = 'smem constant byte address 0x4 - core index']
  #allocation1 [shape = 'u32[72,128]{1,0:T(1,128)}', space=vmem, size = 0x9000, scoped, tag = 'internal scratch']
  %s0 = inlined_call_operand.vmem [shape: bf16[2,1024], index: 0, kind: input, shape index: {}]
  %s1 = inlined_call_operand.hbm [shape: bf16[512,1024], index: 1, kind: input, shape index: {}]
  %s2 = inlined_call_operand.hbm [shape: f32[2,512], index: 2, kind: output, shape index: {}]
  %s3 = sld [smem:[#allocation0]]
  $region45: #{encoder_forward.1} parent=0
    _
  %s5 = ssub.s32 1, %s3
  %s6 = scalar_select 0, %s5, %s3
  $region1: #{encoder_forward.1} parent=0
    #allocation2 [shape = 'u8[1048576]{0}', space=vmem, size = 0x100000, scoped, tag = 'input window, operand 1']
    #allocation3 [shape = 's32[2]{0}', space=sflag, size = 0x8, scoped, tag = 'scoped memory for encoder_forward.1']
    #allocation4 [shape = 's32[2]{0}', space=sflag, size = 0x8, scoped, tag = 'scoped memory for encoder_forward.1']
    #allocation5 [shape = 'u8[4096]{0}', space=vmem, size = 0x1000, scoped, tag = 'output window, operand 0']
    %7 = vsyncpa [#allocation3], 0
    %s8 = scalar_lea.sflag [#allocation3], 1
    %9 = vsyncpa %s8, 0
    %10 = vsyncpa [#allocation4], 0
    %s11 = scalar_lea.sflag [#allocation4], 1
    %12 = vsyncpa %s11, 0
    loop: start=0, step=1, limit=4
    $region2: #{encoder_forward.1} parent=1 // loop_pre_header
      _
    $region3: #{encoder_forward.1} parent=1 // loop_header
      %s14 = sphi 0, %s18
      %p15 = scmp.ge.s32.totalorder %s14, 4
      %s21 = sphi 0, %s33
      %s22 = sphi 0, %s29
      %s23 = sphi 0, %s21
      %s24 = sphi 0, %s22
      %s25 = sphi 0, %s23
      %s26 = sphi 0, %s24
      %s36 = sphi 0, %s38
      %s39 = sphi 0, %s36
      %s40 = sphi 0, %s39
      %s56 = sphi 0, %s40
      %s62 = sphi 0, %s64
      %s65 = sphi 0, %s62
      %s66 = sphi 0, %s65
      %s82 = sphi 0, %s66
      %s90 = sphi 0, %s92
      %s93 = sphi 0, %s90
      %s94 = sphi 0, %s93
      %s110 = sphi 0, %s94
    $region4: #{encoder_forward.1} parent=1 // loop_header_branch
      %17 = sbr.rel (%p15) target = $region8
    $region5: #{encoder_forward.1} parent=1 // loop_body
      %s19 = ssub.s32 %s14, 1
      %s20 = ssub.s32 %s14, 2
      %s27 = sadd.s32 1, %s22
      %p28 = scmp.ge.s32.totalorder %s27, 2
      %s29 = scalar_select %p28, 0, %s27
      %s30 = sadd.s32 1, %s21
      %s31 = scalar_select %p28, %s30, %s21
      %p32 = scmp.ge.s32.totalorder %s31, 1
      %s33 = scalar_select %p32, 0, %s31
      %s34 = ssub.s32 %s21, %s33
      %p35 = scmp.eq.s32.totalorder %s34, 0
      %s37 = sadd.s32 %s36, 1
      %s38 = scalar_select %p35, %s36, %s37
      %p41 = pneg %p35
      %p42 = scmp.eq.s32.totalorder %s14, 1
      %p43 = por %p41, %p42
      %p44 = scmp.ne.s32.totalorder %s36, %s39
      %p45 = scmp.eq.s32.totalorder %s14, 0
      %p46 = por %p44, %p45
      %p47 = scmp.ne.s32.totalorder %s36, %s39
      %p48 = scmp.eq.s32.totalorder %s19, 1
      %p49 = por %p47, %p48
      %p50 = scmp.ne.s32.totalorder %s39, %s40
      %p51 = scmp.eq.s32.totalorder %s19, 0
      %p52 = por %p50, %p51
      %p53 = scmp.ne.s32.totalorder %s39, %s40
      %p54 = scmp.eq.s32.totalorder %s20, 1
      %p55 = por %p53, %p54
      %p57 = scmp.ne.s32.totalorder %s40, %s56
      %p58 = scmp.eq.s32.totalorder %s20, 0
      %p59 = por %p57, %p58
      %s60 = ssub.s32 %s22, %s29
      %p61 = scmp.eq.s32.totalorder %s60, 0
      %s63 = sadd.s32 %s62, 1
      %s64 = scalar_select %p61, %s62, %s63
      %p67 = pneg %p61
      %p68 = scmp.eq.s32.totalorder %s14, 1
      %p69 = por %p67, %p68
      %p70 = scmp.ne.s32.totalorder %s62, %s65
      %p71 = scmp.eq.s32.totalorder %s14, 0
      %p72 = por %p70, %p71
      %p73 = scmp.ne.s32.totalorder %s62, %s65
      %p74 = scmp.eq.s32.totalorder %s19, 1
      %p75 = por %p73, %p74
      %p76 = scmp.ne.s32.totalorder %s65, %s66
      %p77 = scmp.eq.s32.totalorder %s19, 0
      %p78 = por %p76, %p77
      %p79 = scmp.ne.s32.totalorder %s65, %s66
      %p80 = scmp.eq.s32.totalorder %s20, 1
      %p81 = por %p79, %p80
      %p83 = scmp.ne.s32.totalorder %s66, %s82
      %p84 = scmp.eq.s32.totalorder %s20, 0
      %p85 = por %p83, %p84
      %s86 = ssub.s32 %s21, %s33
      %s87 = ssub.s32 %s22, %s29
      %s88 = sor.u32 %s86, %s87
      %p89 = scmp.eq.s32.totalorder %s88, 0
      %s91 = sadd.s32 %s90, 1
      %s92 = scalar_select %p89, %s90, %s91
      %p95 = pneg %p89
      %p96 = scmp.eq.s32.totalorder %s14, 1
      %p97 = por %p95, %p96
      %p98 = scmp.ne.s32.totalorder %s90, %s93
      %p99 = scmp.eq.s32.totalorder %s14, 0
      %p100 = por %p98, %p99
      %p101 = scmp.ne.s32.totalorder %s90, %s93
      %p102 = scmp.eq.s32.totalorder %s19, 1
      %p103 = por %p101, %p102
      %p104 = scmp.ne.s32.totalorder %s93, %s94
      %p105 = scmp.eq.s32.totalorder %s19, 0
      %p106 = por %p104, %p105
      %p107 = scmp.ne.s32.totalorder %s93, %s94
      %p108 = scmp.eq.s32.totalorder %s20, 1
      %p109 = por %p107, %p108
      %p111 = scmp.ne.s32.totalorder %s94, %s110
      %p112 = scmp.eq.s32.totalorder %s20, 0
      %p113 = por %p111, %p112
      %p114 = scmp.le.s32.totalorder 1, %s14
      %p115 = scmp.lt.s32.totalorder %s14, 3
      %p116 = pnand %p114, %p115
      %p117 = pneg %p116
      // Predicated region
      $region9: #{encoder_forward.1} parent=5 // pred_check
        _
      $region10: #{encoder_forward.1} parent=5 // pred_check_branch
        %119 = sbr.rel (%p116) target = $region12
      $region11: #{encoder_forward.1} parent=5 // pred_region
        %s120 = ssub.s32 %s14, 1
        // Predicated region
        $region13: #{encoder_forward.1} parent=11 // pred_check
          %p121 = pneg %p52
        $region14: #{encoder_forward.1} parent=11 // pred_check_branch
          %123 = sbr.rel (%p121) target = $region16
        $region15: #{encoder_forward.1} parent=11 // pred_region
          %p124 = scmp.lt.s32.totalorder %s23, 0
          %s125 = scalar_select %p124, %s23, 0
          %s126 = smul.addr %s125, 8
          %s127 = scalar_lea.vmem %s0, %s126
        $region16: #{encoder_forward.1} parent=11 // pred_fallthru
          _
      $region12: #{encoder_forward.1} parent=5 // pred_fallthru
        _
      %p128 = scmp.lt.s32.totalorder %s14, 2
      // Predicated region
      $region17: #{encoder_forward.1} parent=5 // pred_check
        %p129 = pneg %p128
      $region18: #{encoder_forward.1} parent=5 // pred_check_branch
        %131 = sbr.rel (%p129) target = $region20
      $region19: #{encoder_forward.1} parent=5 // pred_region
        // Predicated region
        $region21: #{encoder_forward.1} parent=19 // pred_check
          %p132 = pneg %p72
        $region22: #{encoder_forward.1} parent=19 // pred_check_branch
          %134 = sbr.rel (%p132) target = $region24
        $region23: #{encoder_forward.1} parent=19 // pred_region
          %s135 = sand.u32 %s62, 1
          %s136 = scalar_lea.sflag [#allocation3], %s135
          %s137 = sand.u32 %s62, 1
          %s138 = smul.addr %s137, 1024
          %s139 = scalar_lea.vmem [#allocation2], %s138
          %s140 = smul.u32 32, %s22
          %142 = vsyncadd %s136, 0
          %s143 = smul.addr %s140, 8
          %s144 = smul.addr %s143, 4
          %s145 = scalar_lea.hbm %s1, %s144
          %s146 = sshll.u32 %s145, 4
          %s147 = int_to_ptr.hbm [resolvable:$true] %s146
          %s148 = sshll.u32 %s139, 4
          %s149 = int_to_ptr.vmem [resolvable:$true] %s148
          %154 = dma.hbm_to_vmem [thread:$0]  %s147, 16384, %s149, %s136, 512, 512, 32
        $region24: #{encoder_forward.1} parent=19 // pred_fallthru
          _
      $region20: #{encoder_forward.1} parent=5 // pred_fallthru
        _
      %p155 = scmp.le.s32.totalorder 1, %s14
      %p156 = scmp.lt.s32.totalorder %s14, 3
      %p157 = pnand %p155, %p156
      %p158 = pneg %p157
      // Predicated region
      $region25: #{encoder_forward.1} parent=5 // pred_check
        _
      $region26: #{encoder_forward.1} parent=5 // pred_check_branch
        %160 = sbr.rel (%p157) target = $region28
      $region27: #{encoder_forward.1} parent=5 // pred_region
        %s161 = ssub.s32 %s14, 1
        %s162 = sand.u32 %s65, 1
        %s163 = scalar_lea.sflag [#allocation3], %s162
        %s164 = sand.u32 %s65, 1
        %s165 = smul.addr %s164, 1024
        %s166 = scalar_lea.vmem [#allocation2], %s165
        // Predicated region
        $region29: #{encoder_forward.1} parent=27 // pred_check
          %p167 = pneg %p78
        $region30: #{encoder_forward.1} parent=27 // pred_check_branch
          %169 = sbr.rel (%p167) target = $region32
        $region31: #{encoder_forward.1} parent=27 // pred_region
          %171 = dma.done %s163, 16384
        $region32: #{encoder_forward.1} parent=27 // pred_fallthru
          _
        %p172 = scmp.lt.s32.totalorder %s23, 0
        %s173 = scalar_select %p172, %s23, 0
        %s174 = smul.addr %s173, 8
        %s175 = scalar_lea.vmem %s0, %s174
        %p176 = pneg %p52
        %p177 = pneg %p49
        %s178 = sand.u32 %s65, 1
        %s179 = scalar_lea.sflag [#allocation3], %s178
        %s180 = sand.u32 %s65, 1
        %s181 = smul.addr %s180, 1024
        %s182 = scalar_lea.vmem [#allocation2], %s181
        %p183 = pneg %p78
        %p184 = pneg %p75
        %p185 = pneg %p106
        %p186 = pneg %p103
        %s187 = sand.u32 %s93, 1
        %s188 = scalar_lea.sflag [#allocation4], %s187
        %s189 = sand.u32 %s93, 1
        %s190 = smul.addr %s189, 4
        %s191 = scalar_lea.vmem [#allocation5], %s190
        %p192 = scmp.lt.s32.totalorder %s23, 0
        %s193 = scalar_select %p192, %s23, 0
        %s194 = smul.addr %s193, 8
        %s195 = scalar_lea.vmem %s0, %s194
        %s196 = smul.u32 32, %s24
        %s197 = smul.u32 2, %s24
        %v198 = vld [vmem:[%s195] sm:$0xff]
        %v199 = vld [vmem:[%s166] sm:$0xff]
        %v200 = vld [vmem:[%s166 + $0x8] sm:$0xff]
        %v201 = vld [vmem:[%s166 + $0x10] sm:$0xff]
        %v202 = vld [vmem:[%s166 + $0x18] sm:$0xff]
        %v203 = vld [vmem:[%s166 + $0x20] sm:$0xff]
        %v204 = vld [vmem:[%s166 + $0x28] sm:$0xff]
        %v205 = vld [vmem:[%s166 + $0x30] sm:$0xff]
        %v206 = vld [vmem:[%s166 + $0x38] sm:$0xff]
        %v207 = vld [vmem:[%s166 + $0x40] sm:$0xff]
        %v208 = vld [vmem:[%s166 + $0x48] sm:$0xff]
        %v209 = vld [vmem:[%s166 + $0x50] sm:$0xff]
        %v210 = vld [vmem:[%s166 + $0x58] sm:$0xff]
        %v211 = vld [vmem:[%s166 + $0x60] sm:$0xff]
        %v212 = vld [vmem:[%s166 + $0x68] sm:$0xff]
        %v213 = vld [vmem:[%s166 + $0x70] sm:$0xff]
        %v214 = vld [vmem:[%s166 + $0x78] sm:$0xff]
        %v215 = vld [vmem:[%s166 + $0x80] sm:$0xff]
        %v216 = vld [vmem:[%s166 + $0x88] sm:$0xff]
        %v217 = vld [vmem:[%s166 + $0x90] sm:$0xff]
        %v218 = vld [vmem:[%s166 + $0x98] sm:$0xff]
        %v219 = vld [vmem:[%s166 + $0xa0] sm:$0xff]
        %v220 = vld [vmem:[%s166 + $0xa8] sm:$0xff]
        %v221 = vld [vmem:[%s166 + $0xb0] sm:$0xff]
        %v222 = vld [vmem:[%s166 + $0xb8] sm:$0xff]
        %v223 = vld [vmem:[%s166 + $0xc0] sm:$0xff]
        %v224 = vld [vmem:[%s166 + $0xc8] sm:$0xff]
        %v225 = vld [vmem:[%s166 + $0xd0] sm:$0xff]
        %v226 = vld [vmem:[%s166 + $0xd8] sm:$0xff]
        %v227 = vld [vmem:[%s166 + $0xe0] sm:$0xff]
        %v228 = vld [vmem:[%s166 + $0xe8] sm:$0xff]
        %v229 = vld [vmem:[%s166 + $0xf0] sm:$0xff]
        %v230 = vld [vmem:[%s166 + $0xf8] sm:$0xff]
        %v231 = vld [vmem:[%s166 + $0x100] sm:$0xff]
        %v232 = vld [vmem:[%s166 + $0x108] sm:$0xff]
        %v233 = vld [vmem:[%s166 + $0x110] sm:$0xff]
        %v234 = vld [vmem:[%s166 + $0x118] sm:$0xff]
        %v235 = vld [vmem:[%s166 + $0x120] sm:$0xff]
        %v236 = vld [vmem:[%s166 + $0x128] sm:$0xff]
        %v237 = vld [vmem:[%s166 + $0x130] sm:$0xff]
        %v238 = vld [vmem:[%s166 + $0x138] sm:$0xff]
        %v239 = vld [vmem:[%s166 + $0x140] sm:$0xff]
        %v240 = vld [vmem:[%s166 + $0x148] sm:$0xff]
        %v241 = vld [vmem:[%s166 + $0x150] sm:$0xff]
        %v242 = vld [vmem:[%s166 + $0x158] sm:$0xff]
        %v243 = vld [vmem:[%s166 + $0x160] sm:$0xff]
        %v244 = vld [vmem:[%s166 + $0x168] sm:$0xff]
        %v245 = vld [vmem:[%s166 + $0x170] sm:$0xff]
        %v246 = vld [vmem:[%s166 + $0x178] sm:$0xff]
        %v247 = vld [vmem:[%s166 + $0x180] sm:$0xff]
        %v248 = vld [vmem:[%s166 + $0x188] sm:$0xff]
        %v249 = vld [vmem:[%s166 + $0x190] sm:$0xff]
        %v250 = vld [vmem:[%s166 + $0x198] sm:$0xff]
        %v251 = vld [vmem:[%s166 + $0x1a0] sm:$0xff]
        %v252 = vld [vmem:[%s166 + $0x1a8] sm:$0xff]
        %v253 = vld [vmem:[%s166 + $0x1b0] sm:$0xff]
        %v254 = vld [vmem:[%s166 + $0x1b8] sm:$0xff]
        %v255 = vld [vmem:[%s166 + $0x1c0] sm:$0xff]
        %v256 = vld [vmem:[%s166 + $0x1c8] sm:$0xff]
        %v257 = vld [vmem:[%s166 + $0x1d0] sm:$0xff]
        %v258 = vld [vmem:[%s166 + $0x1d8] sm:$0xff]
        %v259 = vld [vmem:[%s166 + $0x1e0] sm:$0xff]
        %v260 = vld [vmem:[%s166 + $0x1e8] sm:$0xff]
        %v261 = vld [vmem:[%s166 + $0x1f0] sm:$0xff]
        %v262 = vld [vmem:[%s166 + $0x1f8] sm:$0xff]
        %v263 = vld [vmem:[%s166 + $0x200] sm:$0xff]
        %v264 = vld [vmem:[%s166 + $0x208] sm:$0xff]
        %v265 = vld [vmem:[%s166 + $0x210] sm:$0xff]
        %v266 = vld [vmem:[%s166 + $0x218] sm:$0xff]
        %v267 = vld [vmem:[%s166 + $0x220] sm:$0xff]
        %v268 = vld [vmem:[%s166 + $0x228] sm:$0xff]
        %v269 = vld [vmem:[%s166 + $0x230] sm:$0xff]
        %v270 = vld [vmem:[%s166 + $0x238] sm:$0xff]
        %v271 = vld [vmem:[%s166 + $0x240] sm:$0xff]
        %v272 = vld [vmem:[%s166 + $0x248] sm:$0xff]
        %v273 = vld [vmem:[%s166 + $0x250] sm:$0xff]
        %v274 = vld [vmem:[%s166 + $0x258] sm:$0xff]
        %v275 = vld [vmem:[%s166 + $0x260] sm:$0xff]
        %v276 = vld [vmem:[%s166 + $0x268] sm:$0xff]
        %v277 = vld [vmem:[%s166 + $0x270] sm:$0xff]
        %v278 = vld [vmem:[%s166 + $0x278] sm:$0xff]
        %v279 = vld [vmem:[%s166 + $0x280] sm:$0xff]
        %v280 = vld [vmem:[%s166 + $0x288] sm:$0xff]
        %v281 = vld [vmem:[%s166 + $0x290] sm:$0xff]
        %v282 = vld [vmem:[%s166 + $0x298] sm:$0xff]
        %v283 = vld [vmem:[%s166 + $0x2a0] sm:$0xff]
        %v284 = vld [vmem:[%s166 + $0x2a8] sm:$0xff]
        %v285 = vld [vmem:[%s166 + $0x2b0] sm:$0xff]
        %v286 = vld [vmem:[%s166 + $0x2b8] sm:$0xff]
        %v287 = vld [vmem:[%s166 + $0x2c0] sm:$0xff]
        %v288 = vld [vmem:[%s166 + $0x2c8] sm:$0xff]
        %v289 = vld [vmem:[%s166 + $0x2d0] sm:$0xff]
        %v290 = vld [vmem:[%s166 + $0x2d8] sm:$0xff]
        %v291 = vld [vmem:[%s166 + $0x2e0] sm:$0xff]
        %v292 = vld [vmem:[%s166 + $0x2e8] sm:$0xff]
        %v293 = vld [vmem:[%s166 + $0x2f0] sm:$0xff]
        %v294 = vld [vmem:[%s166 + $0x2f8] sm:$0xff]
        %v295 = vld [vmem:[%s166 + $0x300] sm:$0xff]
        %v296 = vld [vmem:[%s166 + $0x308] sm:$0xff]
        %v297 = vld [vmem:[%s166 + $0x310] sm:$0xff]
        %v298 = vld [vmem:[%s166 + $0x318] sm:$0xff]
        %v299 = vld [vmem:[%s166 + $0x320] sm:$0xff]
        %v300 = vld [vmem:[%s166 + $0x328] sm:$0xff]
        %v301 = vld [vmem:[%s166 + $0x330] sm:$0xff]
        %v302 = vld [vmem:[%s166 + $0x338] sm:$0xff]
        %v303 = vld [vmem:[%s166 + $0x340] sm:$0xff]
        %v304 = vld [vmem:[%s166 + $0x348] sm:$0xff]
        %v305 = vld [vmem:[%s166 + $0x350] sm:$0xff]
        %v306 = vld [vmem:[%s166 + $0x358] sm:$0xff]
        %v307 = vld [vmem:[%s166 + $0x360] sm:$0xff]
        %v308 = vld [vmem:[%s166 + $0x368] sm:$0xff]
        %v309 = vld [vmem:[%s166 + $0x370] sm:$0xff]
        %v310 = vld [vmem:[%s166 + $0x378] sm:$0xff]
        %v311 = vld [vmem:[%s166 + $0x380] sm:$0xff]
        %v312 = vld [vmem:[%s166 + $0x388] sm:$0xff]
        %v313 = vld [vmem:[%s166 + $0x390] sm:$0xff]
        %v314 = vld [vmem:[%s166 + $0x398] sm:$0xff]
        %v315 = vld [vmem:[%s166 + $0x3a0] sm:$0xff]
        %v316 = vld [vmem:[%s166 + $0x3a8] sm:$0xff]
        %v317 = vld [vmem:[%s166 + $0x3b0] sm:$0xff]
        %v318 = vld [vmem:[%s166 + $0x3b8] sm:$0xff]
        %v319 = vld [vmem:[%s166 + $0x3c0] sm:$0xff]
        %v320 = vld [vmem:[%s166 + $0x3c8] sm:$0xff]
        %v321 = vld [vmem:[%s166 + $0x3d0] sm:$0xff]
        %v322 = vld [vmem:[%s166 + $0x3d8] sm:$0xff]
        %v323 = vld [vmem:[%s166 + $0x3e0] sm:$0xff]
        %v324 = vld [vmem:[%s166 + $0x3e8] sm:$0xff]
        %v325 = vld [vmem:[%s166 + $0x3f0] sm:$0xff]
        %v326 = vld [vmem:[%s166 + $0x3f8] sm:$0xff]
        %328 = vst [vmem:[#allocation1] ss:$9 sm:$0xff] %v198
        %v329 = vld [vmem:[#allocation1] sm:$0xff]
        %v330 = vld [vmem:[#allocation1 + $0x9] sm:$0xff]
        %v331 = vld [vmem:[#allocation1 + $0x12] sm:$0xff]
        %v332 = vld [vmem:[#allocation1 + $0x1b] sm:$0xff]
        %v333 = vld [vmem:[#allocation1 + $0x24] sm:$0xff]
        %v334 = vld [vmem:[#allocation1 + $0x2d] sm:$0xff]
        %v335 = vld [vmem:[#allocation1 + $0x36] sm:$0xff]
        %v336 = vld [vmem:[#allocation1 + $0x3f] sm:$0xff]
        %v473 = vunpack.c.l.b16 %v199
        %v474 = vunpack.c.h.b16 %v199
        %v475 = vunpack.c.l.b16 %v200
        %v476 = vunpack.c.h.b16 %v200
        %v477 = vunpack.c.l.b16 %v201
        %v478 = vunpack.c.h.b16 %v201
        %v479 = vunpack.c.l.b16 %v202
        %v480 = vunpack.c.h.b16 %v202
        %v481 = vunpack.c.l.b16 %v203
        %v482 = vunpack.c.h.b16 %v203
        %v483 = vunpack.c.l.b16 %v204
        %v484 = vunpack.c.h.b16 %v204
        %v485 = vunpack.c.l.b16 %v205
        %v486 = vunpack.c.h.b16 %v205
        %v487 = vunpack.c.l.b16 %v206
        %v488 = vunpack.c.h.b16 %v206
        %v489 = vunpack.c.l.b16 %v207
        %v490 = vunpack.c.h.b16 %v207
        %v491 = vunpack.c.l.b16 %v208
        %v492 = vunpack.c.h.b16 %v208
        %v493 = vunpack.c.l.b16 %v209
        %v494 = vunpack.c.h.b16 %v209
        %v495 = vunpack.c.l.b16 %v210
        %v496 = vunpack.c.h.b16 %v210
        %v497 = vunpack.c.l.b16 %v211
        %v498 = vunpack.c.h.b16 %v211
        %v499 = vunpack.c.l.b16 %v212
        %v500 = vunpack.c.h.b16 %v212
        %v501 = vunpack.c.l.b16 %v213
        %v502 = vunpack.c.h.b16 %v213
        %v503 = vunpack.c.l.b16 %v214
        %v504 = vunpack.c.h.b16 %v214
        %v505 = vunpack.c.l.b16 %v215
        %v506 = vunpack.c.h.b16 %v215
        %v507 = vunpack.c.l.b16 %v216
        %v508 = vunpack.c.h.b16 %v216
        %v509 = vunpack.c.l.b16 %v217
        %v510 = vunpack.c.h.b16 %v217
        %v511 = vunpack.c.l.b16 %v218
        %v512 = vunpack.c.h.b16 %v218
        %v513 = vunpack.c.l.b16 %v219
        %v514 = vunpack.c.h.b16 %v219
        %v515 = vunpack.c.l.b16 %v220
        %v516 = vunpack.c.h.b16 %v220
        %v517 = vunpack.c.l.b16 %v221
        %v518 = vunpack.c.h.b16 %v221
        %v519 = vunpack.c.l.b16 %v222
        %v520 = vunpack.c.h.b16 %v222
        %v521 = vunpack.c.l.b16 %v223
        %v522 = vunpack.c.h.b16 %v223
        %v523 = vunpack.c.l.b16 %v224
        %v524 = vunpack.c.h.b16 %v224
        %v525 = vunpack.c.l.b16 %v225
        %v526 = vunpack.c.h.b16 %v225
        %v527 = vunpack.c.l.b16 %v226
        %v528 = vunpack.c.h.b16 %v226
        %v529 = vunpack.c.l.b16 %v227
        %v530 = vunpack.c.h.b16 %v227
        %v531 = vunpack.c.l.b16 %v228
        %v532 = vunpack.c.h.b16 %v228
        %v533 = vunpack.c.l.b16 %v229
        %v534 = vunpack.c.h.b16 %v229
        %v535 = vunpack.c.l.b16 %v230
        %v536 = vunpack.c.h.b16 %v230
        %v537 = vunpack.c.l.b16 %v231
        %v538 = vunpack.c.h.b16 %v231
        %v539 = vunpack.c.l.b16 %v232
        %v540 = vunpack.c.h.b16 %v232
        %v541 = vunpack.c.l.b16 %v233
        %v542 = vunpack.c.h.b16 %v233
        %v543 = vunpack.c.l.b16 %v234
        %v544 = vunpack.c.h.b16 %v234
        %v545 = vunpack.c.l.b16 %v235
        %v546 = vunpack.c.h.b16 %v235
        %v547 = vunpack.c.l.b16 %v236
        %v548 = vunpack.c.h.b16 %v236
        %v549 = vunpack.c.l.b16 %v237
        %v550 = vunpack.c.h.b16 %v237
        %v551 = vunpack.c.l.b16 %v238
        %v552 = vunpack.c.h.b16 %v238
        %v553 = vunpack.c.l.b16 %v239
        %v554 = vunpack.c.h.b16 %v239
        %v555 = vunpack.c.l.b16 %v240
        %v556 = vunpack.c.h.b16 %v240
        %v557 = vunpack.c.l.b16 %v241
        %v558 = vunpack.c.h.b16 %v241
        %v559 = vunpack.c.l.b16 %v242
        %v560 = vunpack.c.h.b16 %v242
        %v561 = vunpack.c.l.b16 %v243
        %v562 = vunpack.c.h.b16 %v243
        %v563 = vunpack.c.l.b16 %v244
        %v564 = vunpack.c.h.b16 %v244
        %v565 = vunpack.c.l.b16 %v245
        %v566 = vunpack.c.h.b16 %v245
        %v567 = vunpack.c.l.b16 %v246
        %v568 = vunpack.c.h.b16 %v246
        %v569 = vunpack.c.l.b16 %v247
        %v570 = vunpack.c.h.b16 %v247
        %v571 = vunpack.c.l.b16 %v248
        %v572 = vunpack.c.h.b16 %v248
        %v573 = vunpack.c.l.b16 %v249
        %v574 = vunpack.c.h.b16 %v249
        %v575 = vunpack.c.l.b16 %v250
        %v576 = vunpack.c.h.b16 %v250
        %v577 = vunpack.c.l.b16 %v251
        %v578 = vunpack.c.h.b16 %v251
        %v579 = vunpack.c.l.b16 %v252
        %v580 = vunpack.c.h.b16 %v252
        %v581 = vunpack.c.l.b16 %v253
        %v582 = vunpack.c.h.b16 %v253
        %v583 = vunpack.c.l.b16 %v254
        %v584 = vunpack.c.h.b16 %v254
        %v585 = vunpack.c.l.b16 %v255
        %v586 = vunpack.c.h.b16 %v255
        %v587 = vunpack.c.l.b16 %v256
        %v588 = vunpack.c.h.b16 %v256
        %v589 = vunpack.c.l.b16 %v257
        %v590 = vunpack.c.h.b16 %v257
        %v591 = vunpack.c.l.b16 %v258
        %v592 = vunpack.c.h.b16 %v258
        %v593 = vunpack.c.l.b16 %v259
        %v594 = vunpack.c.h.b16 %v259
        %v595 = vunpack.c.l.b16 %v260
        %v596 = vunpack.c.h.b16 %v260
        %v597 = vunpack.c.l.b16 %v261
        %v598 = vunpack.c.h.b16 %v261
        %v599 = vunpack.c.l.b16 %v262
        %v600 = vunpack.c.h.b16 %v262
        %v601 = vunpack.c.l.b16 %v263
        %v602 = vunpack.c.h.b16 %v263
        %v603 = vunpack.c.l.b16 %v264
        %v604 = vunpack.c.h.b16 %v264
        %v605 = vunpack.c.l.b16 %v265
        %v606 = vunpack.c.h.b16 %v265
        %v607 = vunpack.c.l.b16 %v266
        %v608 = vunpack.c.h.b16 %v266
        %v609 = vunpack.c.l.b16 %v267
        %v610 = vunpack.c.h.b16 %v267
        %v611 = vunpack.c.l.b16 %v268
        %v612 = vunpack.c.h.b16 %v268
        %v613 = vunpack.c.l.b16 %v269
        %v614 = vunpack.c.h.b16 %v269
        %v615 = vunpack.c.l.b16 %v270
        %v616 = vunpack.c.h.b16 %v270
        %v617 = vunpack.c.l.b16 %v271
        %v618 = vunpack.c.h.b16 %v271
        %v619 = vunpack.c.l.b16 %v272
        %v620 = vunpack.c.h.b16 %v272
        %v621 = vunpack.c.l.b16 %v273
        %v622 = vunpack.c.h.b16 %v273
        %v623 = vunpack.c.l.b16 %v274
        %v624 = vunpack.c.h.b16 %v274
        %v625 = vunpack.c.l.b16 %v275
        %v626 = vunpack.c.h.b16 %v275
        %v627 = vunpack.c.l.b16 %v276
        %v628 = vunpack.c.h.b16 %v276
        %v629 = vunpack.c.l.b16 %v277
        %v630 = vunpack.c.h.b16 %v277
        %v631 = vunpack.c.l.b16 %v278
        %v632 = vunpack.c.h.b16 %v278
        %v633 = vunpack.c.l.b16 %v279
        %v634 = vunpack.c.h.b16 %v279
        %v635 = vunpack.c.l.b16 %v280
        %v636 = vunpack.c.h.b16 %v280
        %v637 = vunpack.c.l.b16 %v281
        %v638 = vunpack.c.h.b16 %v281
        %v639 = vunpack.c.l.b16 %v282
        %v640 = vunpack.c.h.b16 %v282
        %v641 = vunpack.c.l.b16 %v283
        %v642 = vunpack.c.h.b16 %v283
        %v643 = vunpack.c.l.b16 %v284
        %v644 = vunpack.c.h.b16 %v284
        %v645 = vunpack.c.l.b16 %v285
        %v646 = vunpack.c.h.b16 %v285
        %v647 = vunpack.c.l.b16 %v286
        %v648 = vunpack.c.h.b16 %v286
        %v649 = vunpack.c.l.b16 %v287
        %v650 = vunpack.c.h.b16 %v287
        %v651 = vunpack.c.l.b16 %v288
        %v652 = vunpack.c.h.b16 %v288
        %v653 = vunpack.c.l.b16 %v289
        %v654 = vunpack.c.h.b16 %v289
        %v655 = vunpack.c.l.b16 %v290
        %v656 = vunpack.c.h.b16 %v290
        %v657 = vunpack.c.l.b16 %v291
        %v658 = vunpack.c.h.b16 %v291
        %v659 = vunpack.c.l.b16 %v292
        %v660 = vunpack.c.h.b16 %v292
        %v661 = vunpack.c.l.b16 %v293
        %v662 = vunpack.c.h.b16 %v293
        %v663 = vunpack.c.l.b16 %v294
        %v664 = vunpack.c.h.b16 %v294
        %v665 = vunpack.c.l.b16 %v295
        %v666 = vunpack.c.h.b16 %v295
        %v667 = vunpack.c.l.b16 %v296
        %v668 = vunpack.c.h.b16 %v296
        %v669 = vunpack.c.l.b16 %v297
        %v670 = vunpack.c.h.b16 %v297
        %v671 = vunpack.c.l.b16 %v298
        %v672 = vunpack.c.h.b16 %v298
        %v673 = vunpack.c.l.b16 %v299
        %v674 = vunpack.c.h.b16 %v299
        %v675 = vunpack.c.l.b16 %v300
        %v676 = vunpack.c.h.b16 %v300
        %v677 = vunpack.c.l.b16 %v301
        %v678 = vunpack.c.h.b16 %v301
        %v679 = vunpack.c.l.b16 %v302
        %v680 = vunpack.c.h.b16 %v302
        %v681 = vunpack.c.l.b16 %v303
        %v682 = vunpack.c.h.b16 %v303
        %v683 = vunpack.c.l.b16 %v304
        %v684 = vunpack.c.h.b16 %v304
        %v685 = vunpack.c.l.b16 %v305
        %v686 = vunpack.c.h.b16 %v305
        %v687 = vunpack.c.l.b16 %v306
        %v688 = vunpack.c.h.b16 %v306
        %v689 = vunpack.c.l.b16 %v307
        %v690 = vunpack.c.h.b16 %v307
        %v691 = vunpack.c.l.b16 %v308
        %v692 = vunpack.c.h.b16 %v308
        %v693 = vunpack.c.l.b16 %v309
        %v694 = vunpack.c.h.b16 %v309
        %v695 = vunpack.c.l.b16 %v310
        %v696 = vunpack.c.h.b16 %v310
        %v697 = vunpack.c.l.b16 %v311
        %v698 = vunpack.c.h.b16 %v311
        %v699 = vunpack.c.l.b16 %v312
        %v700 = vunpack.c.h.b16 %v312
        %v701 = vunpack.c.l.b16 %v313
        %v702 = vunpack.c.h.b16 %v313
        %v703 = vunpack.c.l.b16 %v314
        %v704 = vunpack.c.h.b16 %v314
        %v705 = vunpack.c.l.b16 %v315
        %v706 = vunpack.c.h.b16 %v315
        %v707 = vunpack.c.l.b16 %v316
        %v708 = vunpack.c.h.b16 %v316
        %v709 = vunpack.c.l.b16 %v317
        %v710 = vunpack.c.h.b16 %v317
        %v711 = vunpack.c.l.b16 %v318
        %v712 = vunpack.c.h.b16 %v318
        %v713 = vunpack.c.l.b16 %v319
        %v714 = vunpack.c.h.b16 %v319
        %v715 = vunpack.c.l.b16 %v320
        %v716 = vunpack.c.h.b16 %v320
        %v717 = vunpack.c.l.b16 %v321
        %v718 = vunpack.c.h.b16 %v321
        %v719 = vunpack.c.l.b16 %v322
        %v720 = vunpack.c.h.b16 %v322
        %v721 = vunpack.c.l.b16 %v323
        %v722 = vunpack.c.h.b16 %v323
        %v723 = vunpack.c.l.b16 %v324
        %v724 = vunpack.c.h.b16 %v324
        %v725 = vunpack.c.l.b16 %v325
        %v726 = vunpack.c.h.b16 %v325
        %v727 = vunpack.c.l.b16 %v326
        %v728 = vunpack.c.h.b16 %v326
        %v729 = vpack.c.b16 %v481, %v473
        %v730 = vpack.c.b16 %v482, %v474
        %v731 = vpack.c.b16 %v483, %v475
        %v732 = vpack.c.b16 %v484, %v476
        %v733 = vpack.c.b16 %v485, %v477
        %v734 = vpack.c.b16 %v486, %v478
        %v735 = vpack.c.b16 %v487, %v479
        %v736 = vpack.c.b16 %v488, %v480
        %v737 = vpack.c.b16 %v497, %v489
        %v738 = vpack.c.b16 %v498, %v490
        %v739 = vpack.c.b16 %v499, %v491
        %v740 = vpack.c.b16 %v500, %v492
        %v741 = vpack.c.b16 %v501, %v493
        %v742 = vpack.c.b16 %v502, %v494
        %v743 = vpack.c.b16 %v503, %v495
        %v744 = vpack.c.b16 %v504, %v496
        %v745 = vpack.c.b16 %v513, %v505
        %v746 = vpack.c.b16 %v514, %v506
        %v747 = vpack.c.b16 %v515, %v507
        %v748 = vpack.c.b16 %v516, %v508
        %v749 = vpack.c.b16 %v517, %v509
        %v750 = vpack.c.b16 %v518, %v510
        %v751 = vpack.c.b16 %v519, %v511
        %v752 = vpack.c.b16 %v520, %v512
        %v753 = vpack.c.b16 %v529, %v521
        %v754 = vpack.c.b16 %v530, %v522
        %v755 = vpack.c.b16 %v531, %v523
        %v756 = vpack.c.b16 %v532, %v524
        %v757 = vpack.c.b16 %v533, %v525
        %v758 = vpack.c.b16 %v534, %v526
        %v759 = vpack.c.b16 %v535, %v527
        %v760 = vpack.c.b16 %v536, %v528
        %v761 = vpack.c.b16 %v545, %v537
        %v762 = vpack.c.b16 %v546, %v538
        %v763 = vpack.c.b16 %v547, %v539
        %v764 = vpack.c.b16 %v548, %v540
        %v765 = vpack.c.b16 %v549, %v541
        %v766 = vpack.c.b16 %v550, %v542
        %v767 = vpack.c.b16 %v551, %v543
        %v768 = vpack.c.b16 %v552, %v544
        %v769 = vpack.c.b16 %v561, %v553
        %v770 = vpack.c.b16 %v562, %v554
        %v771 = vpack.c.b16 %v563, %v555
        %v772 = vpack.c.b16 %v564, %v556
        %v773 = vpack.c.b16 %v565, %v557
        %v774 = vpack.c.b16 %v566, %v558
        %v775 = vpack.c.b16 %v567, %v559
        %v776 = vpack.c.b16 %v568, %v560
        %v777 = vpack.c.b16 %v577, %v569
        %v778 = vpack.c.b16 %v578, %v570
        %v779 = vpack.c.b16 %v579, %v571
        %v780 = vpack.c.b16 %v580, %v572
        %v781 = vpack.c.b16 %v581, %v573
        %v782 = vpack.c.b16 %v582, %v574
        %v783 = vpack.c.b16 %v583, %v575
        %v784 = vpack.c.b16 %v584, %v576
        %v785 = vpack.c.b16 %v593, %v585
        %v786 = vpack.c.b16 %v594, %v586
        %v787 = vpack.c.b16 %v595, %v587
        %v788 = vpack.c.b16 %v596, %v588
        %v789 = vpack.c.b16 %v597, %v589
        %v790 = vpack.c.b16 %v598, %v590
        %v791 = vpack.c.b16 %v599, %v591
        %v792 = vpack.c.b16 %v600, %v592
        %v793 = vpack.c.b16 %v609, %v601
        %v794 = vpack.c.b16 %v610, %v602
        %v795 = vpack.c.b16 %v611, %v603
        %v796 = vpack.c.b16 %v612, %v604
        %v797 = vpack.c.b16 %v613, %v605
        %v798 = vpack.c.b16 %v614, %v606
        %v799 = vpack.c.b16 %v615, %v607
        %v800 = vpack.c.b16 %v616, %v608
        %v801 = vpack.c.b16 %v625, %v617
        %v802 = vpack.c.b16 %v626, %v618
        %v803 = vpack.c.b16 %v627, %v619
        %v804 = vpack.c.b16 %v628, %v620
        %v805 = vpack.c.b16 %v629, %v621
        %v806 = vpack.c.b16 %v630, %v622
        %v807 = vpack.c.b16 %v631, %v623
        %v808 = vpack.c.b16 %v632, %v624
        %v809 = vpack.c.b16 %v641, %v633
        %v810 = vpack.c.b16 %v642, %v634
        %v811 = vpack.c.b16 %v643, %v635
        %v812 = vpack.c.b16 %v644, %v636
        %v813 = vpack.c.b16 %v645, %v637
        %v814 = vpack.c.b16 %v646, %v638
        %v815 = vpack.c.b16 %v647, %v639
        %v816 = vpack.c.b16 %v648, %v640
        %v817 = vpack.c.b16 %v657, %v649
        %v818 = vpack.c.b16 %v658, %v650
        %v819 = vpack.c.b16 %v659, %v651
        %v820 = vpack.c.b16 %v660, %v652
        %v821 = vpack.c.b16 %v661, %v653
        %v822 = vpack.c.b16 %v662, %v654
        %v823 = vpack.c.b16 %v663, %v655
        %v824 = vpack.c.b16 %v664, %v656
        %v825 = vpack.c.b16 %v673, %v665
        %v826 = vpack.c.b16 %v674, %v666
        %v827 = vpack.c.b16 %v675, %v667
        %v828 = vpack.c.b16 %v676, %v668
        %v829 = vpack.c.b16 %v677, %v669
        %v830 = vpack.c.b16 %v678, %v670
        %v831 = vpack.c.b16 %v679, %v671
        %v832 = vpack.c.b16 %v680, %v672
        %v833 = vpack.c.b16 %v689, %v681
        %v834 = vpack.c.b16 %v690, %v682
        %v835 = vpack.c.b16 %v691, %v683
        %v836 = vpack.c.b16 %v692, %v684
        %v837 = vpack.c.b16 %v693, %v685
        %v838 = vpack.c.b16 %v694, %v686
        %v839 = vpack.c.b16 %v695, %v687
        %v840 = vpack.c.b16 %v696, %v688
        %v841 = vpack.c.b16 %v705, %v697
        %v842 = vpack.c.b16 %v706, %v698
        %v843 = vpack.c.b16 %v707, %v699
        %v844 = vpack.c.b16 %v708, %v700
        %v845 = vpack.c.b16 %v709, %v701
        %v846 = vpack.c.b16 %v710, %v702
        %v847 = vpack.c.b16 %v711, %v703
        %v848 = vpack.c.b16 %v712, %v704
        %v849 = vpack.c.b16 %v721, %v713
        %v850 = vpack.c.b16 %v722, %v714
        %v851 = vpack.c.b16 %v723, %v715
        %v852 = vpack.c.b16 %v724, %v716
        %v853 = vpack.c.b16 %v725, %v717
        %v854 = vpack.c.b16 %v726, %v718
        %v855 = vpack.c.b16 %v727, %v719
        %v856 = vpack.c.b16 %v728, %v720
        %985 = vmatpush.bf16.xpose.msra.mxu0 %v785
        %986 = vmatpush.bf16.xpose.msra.mxu0 %v777
        %987 = vmatpush.bf16.xpose.msra.mxu0 %v769
        %988 = vmatpush.bf16.xpose.msra.mxu0 %v761
        %989 = vmatpush.bf16.xpose.msra.mxu0 %v753
        %990 = vmatpush.bf16.xpose.msra.mxu0 %v745
        %991 = vmatpush.bf16.xpose.msra.mxu0 %v737
        %992 = vmatpush.bf16.xpose.msra.mxu0 %v729
        %993 = vmatmul.bf16.gmra.mxu0 %v329
        %v994 = vpop.f32.mrf.mxu0
        %v995 = vadd.f32 0.0, %v994
        %v996 = vpop.f32.mrf.mxu0
        %997 = vdwg.mxu0
        %998 = vmatpush.bf16.xpose.msra.mxu0 %v786
        %999 = vmatpush.bf16.xpose.msra.mxu0 %v778
        %1000 = vmatpush.bf16.xpose.msra.mxu0 %v770
        %1001 = vmatpush.bf16.xpose.msra.mxu0 %v762
        %1002 = vmatpush.bf16.xpose.msra.mxu0 %v754
        %1003 = vmatpush.bf16.xpose.msra.mxu0 %v746
        %1004 = vmatpush.bf16.xpose.msra.mxu0 %v738
        %1005 = vmatpush.bf16.xpose.msra.mxu0 %v730
        %1006 = vmatmul.bf16.gmra.mxu0 %v330
        %v1007 = vpop.f32.mrf.mxu0
        %v1008 = vadd.f32 %v995, %v1007
        %v1009 = vpop.f32.mrf.mxu0
        %1010 = vdwg.mxu0
        %1011 = vmatpush.bf16.xpose.msra.mxu0 %v787
        %1012 = vmatpush.bf16.xpose.msra.mxu0 %v779
        %1013 = vmatpush.bf16.xpose.msra.mxu0 %v771
        %1014 = vmatpush.bf16.xpose.msra.mxu0 %v763
        %1015 = vmatpush.bf16.xpose.msra.mxu0 %v755
        %1016 = vmatpush.bf16.xpose.msra.mxu0 %v747
        %1017 = vmatpush.bf16.xpose.msra.mxu0 %v739
        %1018 = vmatpush.bf16.xpose.msra.mxu0 %v731
        %1019 = vmatmul.bf16.gmra.mxu0 %v331
        %v1020 = vpop.f32.mrf.mxu0
        %v1021 = vadd.f32 %v1008, %v1020
        %v1022 = vpop.f32.mrf.mxu0
        %1023 = vdwg.mxu0
        %1024 = vmatpush.bf16.xpose.msra.mxu0 %v788
        %1025 = vmatpush.bf16.xpose.msra.mxu0 %v780
        %1026 = vmatpush.bf16.xpose.msra.mxu0 %v772
        %1027 = vmatpush.bf16.xpose.msra.mxu0 %v764
        %1028 = vmatpush.bf16.xpose.msra.mxu0 %v756
        %1029 = vmatpush.bf16.xpose.msra.mxu0 %v748
        %1030 = vmatpush.bf16.xpose.msra.mxu0 %v740
        %1031 = vmatpush.bf16.xpose.msra.mxu0 %v732
        %1032 = vmatmul.bf16.gmra.mxu0 %v332
        %v1033 = vpop.f32.mrf.mxu0
        %v1034 = vadd.f32 %v1021, %v1033
        %v1035 = vpop.f32.mrf.mxu0
        %1036 = vdwg.mxu0
        %1037 = vmatpush.bf16.xpose.msra.mxu0 %v789
        %1038 = vmatpush.bf16.xpose.msra.mxu0 %v781
        %1039 = vmatpush.bf16.xpose.msra.mxu0 %v773
        %1040 = vmatpush.bf16.xpose.msra.mxu0 %v765
        %1041 = vmatpush.bf16.xpose.msra.mxu0 %v757
        %1042 = vmatpush.bf16.xpose.msra.mxu0 %v749
        %1043 = vmatpush.bf16.xpose.msra.mxu0 %v741
        %1044 = vmatpush.bf16.xpose.msra.mxu0 %v733
        %1045 = vmatmul.bf16.gmra.mxu0 %v333
        %v1046 = vpop.f32.mrf.mxu0
        %v1047 = vadd.f32 %v1034, %v1046
        %v1048 = vpop.f32.mrf.mxu0
        %1049 = vdwg.mxu0
        %1050 = vmatpush.bf16.xpose.msra.mxu0 %v790
        %1051 = vmatpush.bf16.xpose.msra.mxu0 %v782
        %1052 = vmatpush.bf16.xpose.msra.mxu0 %v774
        %1053 = vmatpush.bf16.xpose.msra.mxu0 %v766
        %1054 = vmatpush.bf16.xpose.msra.mxu0 %v758
        %1055 = vmatpush.bf16.xpose.msra.mxu0 %v750
        %1056 = vmatpush.bf16.xpose.msra.mxu0 %v742
        %1057 = vmatpush.bf16.xpose.msra.mxu0 %v734
        %1058 = vmatmul.bf16.gmra.mxu0 %v334
        %v1059 = vpop.f32.mrf.mxu0
        %v1060 = vadd.f32 %v1047, %v1059
        %v1061 = vpop.f32.mrf.mxu0
        %1062 = vdwg.mxu0
        %1063 = vmatpush.bf16.xpose.msra.mxu0 %v791
        %1064 = vmatpush.bf16.xpose.msra.mxu0 %v783
        %1065 = vmatpush.bf16.xpose.msra.mxu0 %v775
        %1066 = vmatpush.bf16.xpose.msra.mxu0 %v767
        %1067 = vmatpush.bf16.xpose.msra.mxu0 %v759
        %1068 = vmatpush.bf16.xpose.msra.mxu0 %v751
        %1069 = vmatpush.bf16.xpose.msra.mxu0 %v743
        %1070 = vmatpush.bf16.xpose.msra.mxu0 %v735
        %1071 = vmatmul.bf16.gmra.mxu0 %v335
        %v1072 = vpop.f32.mrf.mxu0
        %v1073 = vadd.f32 %v1060, %v1072
        %v1074 = vpop.f32.mrf.mxu0
        %1075 = vdwg.mxu0
        %1076 = vmatpush.bf16.xpose.msra.mxu0 %v792
        %1077 = vmatpush.bf16.xpose.msra.mxu0 %v784
        %1078 = vmatpush.bf16.xpose.msra.mxu0 %v776
        %1079 = vmatpush.bf16.xpose.msra.mxu0 %v768
        %1080 = vmatpush.bf16.xpose.msra.mxu0 %v760
        %1081 = vmatpush.bf16.xpose.msra.mxu0 %v752
        %1082 = vmatpush.bf16.xpose.msra.mxu0 %v744
        %1083 = vmatpush.bf16.xpose.msra.mxu0 %v736
        %1084 = vmatmul.bf16.gmra.mxu0 %v336
        %v1085 = vpop.f32.mrf.mxu0
        %v1086 = vadd.f32 %v1073, %v1085
        %v1087 = vpop.f32.mrf.mxu0
        %1088 = vdwg.mxu0
        %1089 = vmatpush.bf16.xpose.msra.mxu0 %v849
        %1090 = vmatpush.bf16.xpose.msra.mxu0 %v841
        %1091 = vmatpush.bf16.xpose.msra.mxu0 %v833
        %1092 = vmatpush.bf16.xpose.msra.mxu0 %v825
        %1093 = vmatpush.bf16.xpose.msra.mxu0 %v817
        %1094 = vmatpush.bf16.xpose.msra.mxu0 %v809
        %1095 = vmatpush.bf16.xpose.msra.mxu0 %v801
        %1096 = vmatpush.bf16.xpose.msra.mxu0 %v793
        %1097 = vmatmul.bf16.gmra.mxu0 %v329
        %v1098 = vpop.f32.mrf.mxu0
        %v1099 = vadd.f32 0.0, %v1098
        %v1100 = vpop.f32.mrf.mxu0
        %1101 = vdwg.mxu0
        %1102 = vmatpush.bf16.xpose.msra.mxu0 %v850
        %1103 = vmatpush.bf16.xpose.msra.mxu0 %v842
        %1104 = vmatpush.bf16.xpose.msra.mxu0 %v834
        %1105 = vmatpush.bf16.xpose.msra.mxu0 %v826
        %1106 = vmatpush.bf16.xpose.msra.mxu0 %v818
        %1107 = vmatpush.bf16.xpose.msra.mxu0 %v810
        %1108 = vmatpush.bf16.xpose.msra.mxu0 %v802
        %1109 = vmatpush.bf16.xpose.msra.mxu0 %v794
        %1110 = vmatmul.bf16.gmra.mxu0 %v330
        %v1111 = vpop.f32.mrf.mxu0
        %v1112 = vadd.f32 %v1099, %v1111
        %v1113 = vpop.f32.mrf.mxu0
        %1114 = vdwg.mxu0
        %1115 = vmatpush.bf16.xpose.msra.mxu0 %v851
        %1116 = vmatpush.bf16.xpose.msra.mxu0 %v843
        %1117 = vmatpush.bf16.xpose.msra.mxu0 %v835
        %1118 = vmatpush.bf16.xpose.msra.mxu0 %v827
        %1119 = vmatpush.bf16.xpose.msra.mxu0 %v819
        %1120 = vmatpush.bf16.xpose.msra.mxu0 %v811
        %1121 = vmatpush.bf16.xpose.msra.mxu0 %v803
        %1122 = vmatpush.bf16.xpose.msra.mxu0 %v795
        %1123 = vmatmul.bf16.gmra.mxu0 %v331
        %v1124 = vpop.f32.mrf.mxu0
        %v1125 = vadd.f32 %v1112, %v1124
        %v1126 = vpop.f32.mrf.mxu0
        %1127 = vdwg.mxu0
        %1128 = vmatpush.bf16.xpose.msra.mxu0 %v852
        %1129 = vmatpush.bf16.xpose.msra.mxu0 %v844
        %1130 = vmatpush.bf16.xpose.msra.mxu0 %v836
        %1131 = vmatpush.bf16.xpose.msra.mxu0 %v828
        %1132 = vmatpush.bf16.xpose.msra.mxu0 %v820
        %1133 = vmatpush.bf16.xpose.msra.mxu0 %v812
        %1134 = vmatpush.bf16.xpose.msra.mxu0 %v804
        %1135 = vmatpush.bf16.xpose.msra.mxu0 %v796
        %1136 = vmatmul.bf16.gmra.mxu0 %v332
        %v1137 = vpop.f32.mrf.mxu0
        %v1138 = vadd.f32 %v1125, %v1137
        %v1139 = vpop.f32.mrf.mxu0
        %1140 = vdwg.mxu0
        %1141 = vmatpush.bf16.xpose.msra.mxu0 %v853
        %1142 = vmatpush.bf16.xpose.msra.mxu0 %v845
        %1143 = vmatpush.bf16.xpose.msra.mxu0 %v837
        %1144 = vmatpush.bf16.xpose.msra.mxu0 %v829
        %1145 = vmatpush.bf16.xpose.msra.mxu0 %v821
        %1146 = vmatpush.bf16.xpose.msra.mxu0 %v813
        %1147 = vmatpush.bf16.xpose.msra.mxu0 %v805
        %1148 = vmatpush.bf16.xpose.msra.mxu0 %v797
        %1149 = vmatmul.bf16.gmra.mxu0 %v333
        %v1150 = vpop.f32.mrf.mxu0
        %v1151 = vadd.f32 %v1138, %v1150
        %v1152 = vpop.f32.mrf.mxu0
        %1153 = vdwg.mxu0
        %1154 = vmatpush.bf16.xpose.msra.mxu0 %v854
        %1155 = vmatpush.bf16.xpose.msra.mxu0 %v846
        %1156 = vmatpush.bf16.xpose.msra.mxu0 %v838
        %1157 = vmatpush.bf16.xpose.msra.mxu0 %v830
        %1158 = vmatpush.bf16.xpose.msra.mxu0 %v822
        %1159 = vmatpush.bf16.xpose.msra.mxu0 %v814
        %1160 = vmatpush.bf16.xpose.msra.mxu0 %v806
        %1161 = vmatpush.bf16.xpose.msra.mxu0 %v798
        %1162 = vmatmul.bf16.gmra.mxu0 %v334
        %v1163 = vpop.f32.mrf.mxu0
        %v1164 = vadd.f32 %v1151, %v1163
        %v1165 = vpop.f32.mrf.mxu0
        %1166 = vdwg.mxu0
        %1167 = vmatpush.bf16.xpose.msra.mxu0 %v855
        %1168 = vmatpush.bf16.xpose.msra.mxu0 %v847
        %1169 = vmatpush.bf16.xpose.msra.mxu0 %v839
        %1170 = vmatpush.bf16.xpose.msra.mxu0 %v831
        %1171 = vmatpush.bf16.xpose.msra.mxu0 %v823
        %1172 = vmatpush.bf16.xpose.msra.mxu0 %v815
        %1173 = vmatpush.bf16.xpose.msra.mxu0 %v807
        %1174 = vmatpush.bf16.xpose.msra.mxu0 %v799
        %1175 = vmatmul.bf16.gmra.mxu0 %v335
        %v1176 = vpop.f32.mrf.mxu0
        %v1177 = vadd.f32 %v1164, %v1176
        %v1178 = vpop.f32.mrf.mxu0
        %1179 = vdwg.mxu0
        %1180 = vmatpush.bf16.xpose.msra.mxu0 %v856
        %1181 = vmatpush.bf16.xpose.msra.mxu0 %v848
        %1182 = vmatpush.bf16.xpose.msra.mxu0 %v840
        %1183 = vmatpush.bf16.xpose.msra.mxu0 %v832
        %1184 = vmatpush.bf16.xpose.msra.mxu0 %v824
        %1185 = vmatpush.bf16.xpose.msra.mxu0 %v816
        %1186 = vmatpush.bf16.xpose.msra.mxu0 %v808
        %1187 = vmatpush.bf16.xpose.msra.mxu0 %v800
        %1188 = vmatmul.bf16.gmra.mxu0 %v336
        %v1189 = vpop.f32.mrf.mxu0
        %v1190 = vadd.f32 %v1177, %v1189
        %v1191 = vpop.f32.mrf.mxu0
        %1192 = vdwg.mxu0
        %vm1193 = vcmp.gt.f32.partialorder %v1086, 0.0
        %vm1194 = vcmp.gt.f32.partialorder %v1190, 0.0
        %v1195 = vsel %vm1193, 1.0, -1.0
        %v1196 = vsel %vm1194, 1.0, -1.0
        %v1199 = vrot.slane %v1196, 6
        %vm1200 = vcmask 1041408
        %v1201 = vsel %vm1200, %v1195, %v1199
        %1203 = vst [vmem:[%s191] sm:$0xf] %v1201
        %s1204 = sand.u32 %s93, 1
        %s1205 = scalar_lea.sflag [#allocation4], %s1204
        %s1206 = sand.u32 %s93, 1
        %s1207 = smul.addr %s1206, 4
        %s1208 = scalar_lea.vmem [#allocation5], %s1207
        // Predicated region
        $region33: #{encoder_forward.1} parent=27 // pred_check
          %p1209 = pneg %p103
        $region34: #{encoder_forward.1} parent=27 // pred_check_branch
          %1211 = sbr.rel (%p1209) target = $region36
        $region35: #{encoder_forward.1} parent=27 // pred_region
          %s1212 = smul.u32 2, %s24
          %1214 = vsyncadd %s1205, 0
          %s1215 = smul.addr %s23, 4
          %s1216 = sadd.s32 %s1212, %s1215
          %s1217 = smul.addr %s1216, 2
          %s1218 = scalar_lea.hbm %s2, %s1217
          %s1220 = sshll.u32 %s1208, 4
          %s1221 = int_to_ptr.vmem [resolvable:$true] %s1220
          %s1222 = sshll.u32 %s1218, 4
          %s1223 = int_to_ptr.hbm [resolvable:$true] %s1222
          %1225 = dma.vmem_to_hbm [thread:$0]  %s1221, 64, %s1223, %s1205
        $region36: #{encoder_forward.1} parent=27 // pred_fallthru
          _
      $region28: #{encoder_forward.1} parent=5 // pred_fallthru
        _
      %p1226 = scmp.le.s32.totalorder 2, %s14
      // Predicated region
      $region37: #{encoder_forward.1} parent=5 // pred_check
        %p1227 = pneg %p1226
      $region38: #{encoder_forward.1} parent=5 // pred_check_branch
        %1229 = sbr.rel (%p1227) target = $region40
      $region39: #{encoder_forward.1} parent=5 // pred_region
        %s1230 = ssub.s32 %s14, 2
        // Predicated region
        $region41: #{encoder_forward.1} parent=39 // pred_check
          %p1231 = pneg %p109
        $region42: #{encoder_forward.1} parent=39 // pred_check_branch
          %1233 = sbr.rel (%p1231) target = $region44
        $region43: #{encoder_forward.1} parent=39 // pred_region
          %s1234 = sand.u32 %s94, 1
          %s1235 = scalar_lea.sflag [#allocation4], %s1234
          %s1236 = sand.u32 %s94, 1
          %s1237 = smul.addr %s1236, 4
          %s1238 = scalar_lea.vmem [#allocation5], %s1237
          %1240 = dma.done %s1235, 64
        $region44: #{encoder_forward.1} parent=39 // pred_fallthru
          _
      $region40: #{encoder_forward.1} parent=5 // pred_fallthru
        _
    $region6: #{encoder_forward.1} parent=1 // loop_footer
      %s18 = sadd.s32 1, %s14
    $region7: #{encoder_forward.1} parent=1 // loop_footer_branch
      %13 = sbr.rel target = $region3
    $region8: #{encoder_forward.1} parent=1 // loop_exit
      _
    %1241 = vsyncpa [#allocation3], 1
    %s1242 = scalar_lea.sflag [#allocation3], 1
    %1243 = vsyncpa %s1242, 1
    %1244 = vsyncpa [#allocation4], 1
    %s1245 = scalar_lea.sflag [#allocation4], 1
    %1246 = vsyncpa %s1245, 1

</llo_original>
